<compile_context>
chip_gen: v7x
topology: tpu7x:2x2x1
jax: 0.10.0
libtpu: 0.0.40
codegen_flags: <defaults>
</compile_context>

<pallas_src>
import functools
import math

import numpy as np
import jax
import jax.numpy as jnp
from jax.experimental import pallas as pl
from jax.experimental.pallas import tpu as pltpu

# ----------------------------------------------------------------------------
# Hyper-parameters (deeplite yolov5 default TRAIN hyp_cfg)
# ----------------------------------------------------------------------------
HYP = dict(giou=0.05, cls=0.5, cls_pw=1.0, obj=1.0, obj_pw=1.0,
           fl_gamma=0.0, anchor_t=4.0, label_smoothing=0.0)
GR = 1.0                    # self.gr (baked in: tobj = clamp(iou, 0))


def smooth_bce(eps=0.0):
    return 1.0 - 0.5 * eps, 0.5 * eps


# ----------------------------------------------------------------------------
# In-kernel math helpers (VPU/EUP friendly primitives only)
# ----------------------------------------------------------------------------
def _sigmoid(x):
    # sign-split stable sigmoid: one exp, one divide
    z = jnp.exp(-jnp.abs(x))
    inv = 1.0 / (1.0 + z)
    return jnp.where(x >= 0.0, inv, 1.0 - inv)


def _atan(x):
    # float32-accurate arctan (cephes atanf) built from mul/add/div/select,
    # since Mosaic has no native atan lowering.
    sign = jnp.where(x < 0.0, -1.0, 1.0)
    ax = jnp.abs(x)
    big = ax > 2.414213562373095        # tan(3*pi/8)
    mid = ax > 0.41421356237309503      # tan(pi/8)
    base = jnp.where(big, jnp.float32(math.pi / 2),
                     jnp.where(mid, jnp.float32(math.pi / 4), jnp.float32(0.0)))
    safe = jnp.where(big, ax, 1.0)
    xr = jnp.where(big, -1.0 / safe,
                   jnp.where(mid, (ax - 1.0) / (ax + 1.0), ax))
    z = xr * xr
    p = ((((8.05374449538e-2 * z - 1.38776856032e-1) * z
           + 1.99777106478e-1) * z - 3.33329491539e-1) * z * xr + xr)
    return sign * (base + p)


# ----------------------------------------------------------------------------
# Kernel 1: per-target box decode + CIoU + class BCE (lane-dense layout:
#           features along sublanes, targets along the 128-lane axis)
# ----------------------------------------------------------------------------
def _target_kernel(pbox_ref, tbox_ref, anch_ref, mask_ref, pcls_ref, tmat_ref,
                   lbox_ref, lcls_ref, siou_ref, *, cls_pw):
    eps = 1e-7
    m = mask_ref[...]                                  # (1, NP) validity mask

    # sigmoid box decode (each quantity is a (1, NP) lane-dense row)
    px = _sigmoid(pbox_ref[0:1, :]) * 2.0 - 0.5
    py = _sigmoid(pbox_ref[1:2, :]) * 2.0 - 0.5
    pw = (_sigmoid(pbox_ref[2:3, :]) * 2.0) ** 2 * anch_ref[0:1, :]
    ph = (_sigmoid(pbox_ref[3:4, :]) * 2.0) ** 2 * anch_ref[1:2, :]

    tx, ty = tbox_ref[0:1, :], tbox_ref[1:2, :]
    tw, th = tbox_ref[2:3, :], tbox_ref[3:4, :]

    b1x1, b1x2 = px - pw * 0.5, px + pw * 0.5
    b1y1, b1y2 = py - ph * 0.5, py + ph * 0.5
    b2x1, b2x2 = tx - tw * 0.5, tx + tw * 0.5
    b2y1, b2y2 = ty - th * 0.5, ty + th * 0.5

    inter = (jnp.maximum(jnp.minimum(b1x2, b2x2) - jnp.maximum(b1x1, b2x1), 0.0)
             * jnp.maximum(jnp.minimum(b1y2, b2y2) - jnp.maximum(b1y1, b2y1), 0.0))
    w1, h1 = b1x2 - b1x1, b1y2 - b1y1 + eps
    w2, h2 = b2x2 - b2x1, b2y2 - b2y1 + eps
    union = w1 * h1 + w2 * h2 - inter + eps
    iou = inter / union

    cw = jnp.maximum(b1x2, b2x2) - jnp.minimum(b1x1, b2x1)
    ch = jnp.maximum(b1y2, b2y2) - jnp.minimum(b1y1, b2y1)
    c2 = cw * cw + ch * ch + eps
    rho2 = ((b2x1 + b2x2 - b1x1 - b1x2) ** 2
            + (b2y1 + b2y2 - b1y1 - b1y2) ** 2) * 0.25
    # atan(w2/h2) - atan(w1/h1) == atan((w2*h1 - w1*h2) / (h1*h2 + w1*w2))
    # (valid since all w/h ratios are non-negative) -> single atan polynomial.
    dv = _atan((w2 * h1 - w1 * h2) / (h1 * h2 + w1 * w2))
    v = (4.0 / (math.pi ** 2)) * dv * dv
    alpha = v / (v - iou + (1.0 + eps))
    ciou = iou - (rho2 / c2 + v * alpha)               # (1, NP)

    # sum of (1 - CIoU) over valid targets (mean taken outside / n)
    lbox_ref[...] = jnp.sum((1.0 - ciou) * m, keepdims=True)

    # classification BCE-with-logits, pos_weight = cls_pw (sum; mean outside),
    # single shared log(1 + exp(-|x|)) term.
    x = pcls_ref[...]                                  # (nc, NP) logits
    t = tmat_ref[...]                                  # (nc, NP) cp/cn targets
    l1p = jnp.log(1.0 + jnp.exp(-jnp.abs(x)))
    bce = (cls_pw * t * (jnp.maximum(-x, 0.0) + l1p)
           + (1.0 - t) * (jnp.maximum(x, 0.0) + l1p))
    lcls_ref[...] = jnp.sum(bce * m, keepdims=True)

    # clamped iou scores used to fill tobj (gr = 1.0), lane-dense (1, NP)
    siou_ref[...] = jnp.maximum(ciou, 0.0) * m


def target_losses_kernel(pbox_t, tbox_t, anch_t, mask, pcls_t, tmat_t, cls_pw):
    np_cols = pbox_t.shape[1]
    kern = functools.partial(_target_kernel, cls_pw=float(cls_pw))
    vmem = pl.BlockSpec(memory_space=pltpu.MemorySpace.VMEM)
    return pl.pallas_call(
        kern,
        out_shape=(jax.ShapeDtypeStruct((1, 1), jnp.float32),
                   jax.ShapeDtypeStruct((1, 1), jnp.float32),
                   jax.ShapeDtypeStruct((1, np_cols), jnp.float32)),
        in_specs=[vmem] * 6,
        out_specs=(vmem, vmem, vmem),
    )(pbox_t, tbox_t, anch_t, mask, pcls_t, tmat_t)


# ----------------------------------------------------------------------------
# Kernel 2: fused objectness BCE-with-logits over all pyramid levels.
# Per-level weight balance[i]/N_i is baked in as compile-time constants and
# selected from the tile index; padded elements (x=-100, y=0) contribute 0.
# Accumulation is into a lane-dense resident VMEM output block per core.
# ----------------------------------------------------------------------------
def _obj_bce_kernel(x_ref, y_ref, acc_ref, *, pos_weight, level_starts,
                    level_weights, tiles_per_core):
    c = pl.program_id(0)
    i = pl.program_id(1)

    @pl.when(i == 0)
    def _init():
        acc_ref[...] = jnp.zeros_like(acc_ref)

    tile_idx = c * tiles_per_core + i
    w = jnp.float32(level_weights[0])
    for s, wl in zip(level_starts[1:], level_weights[1:]):
        w = jnp.where(tile_idx >= s, jnp.float32(wl), w)

    x = x_ref[...]
    y = y_ref[...]
    l1p = jnp.log(1.0 + jnp.exp(-jnp.abs(x)))          # one exp + one log
    bce = (pos_weight * y * (jnp.maximum(-x, 0.0) + l1p)
           + (1.0 - y) * (jnp.maximum(x, 0.0) + l1p))
    acc_ref[...] += w * bce


def fused_obj_bce(x_parts, y_parts, level_sizes, balance, pos_weight):
    lane = 128
    rows_needed = (max(level_sizes) + lane - 1) // lane
    tr = int(min(512, max(8, ((rows_needed + 7) // 8) * 8)))
    tile = tr * lane

    xs, ys = [], []
    tiles_per_level, weights = [], []
    for x, y, ne, bal in zip(x_parts, y_parts, level_sizes, balance):
        ntile = (ne + tile - 1) // tile
        pad = ntile * tile - ne
        # pad x with a large negative so BCE of the padded tail is exactly 0
        xs.append(jnp.pad(x.astype(jnp.float32), (0, pad), constant_values=-100.0))
        ys.append(jnp.pad(y.astype(jnp.float32), (0, pad)))
        tiles_per_level.append(ntile)
        weights.append(float(bal) / float(ne))

    n_tiles = sum(tiles_per_level)
    nsplit = 2                      # feed both v7x TensorCores; no-op on 1-TC chips
    tpc = (n_tiles + nsplit - 1) // nsplit
    extra = nsplit * tpc - n_tiles
    if extra:
        xs.append(jnp.full((extra * tile,), -100.0, jnp.float32))
        ys.append(jnp.zeros((extra * tile,), jnp.float32))
    x2 = jnp.concatenate(xs).reshape(nsplit * tpc * tr, lane)
    y2 = jnp.concatenate(ys).reshape(nsplit * tpc * tr, lane)

    starts = [0]
    for t in tiles_per_level[:-1]:
        starts.append(starts[-1] + t)

    kern = functools.partial(
        _obj_bce_kernel, pos_weight=float(pos_weight),
        level_starts=tuple(int(s) for s in starts),
        level_weights=tuple(float(w) for w in weights),
        tiles_per_core=int(tpc))

    acc = pl.pallas_call(
        kern,
        out_shape=jax.ShapeDtypeStruct((nsplit, tr, lane), jnp.float32),
        grid_spec=pltpu.PrefetchScalarGridSpec(
            num_scalar_prefetch=0,
            grid=(nsplit, tpc),
            in_specs=[pl.BlockSpec((tr, lane), lambda c, i: (c * tpc + i, 0)),
                      pl.BlockSpec((tr, lane), lambda c, i: (c * tpc + i, 0))],
            out_specs=pl.BlockSpec((None, tr, lane), lambda c, i: (c, 0, 0)),
        ),
        compiler_params=pltpu.CompilerParams(
            dimension_semantics=("parallel", "arbitrary")),
    )(x2, y2)
    # already includes balance[i] / N_i per level
    return jnp.sum(acc)


# ----------------------------------------------------------------------------
# Host-side glue: target preparation (mirrors the torch reference exactly).
# ----------------------------------------------------------------------------
def get_yolov5_targets_np(raw_targets, labels_length, img_size):
    # raw_targets: (bs, max_labels, 5) pixel [x1, y1, x2, y2, class]
    # -> (nt, 6) rows [img_idx, class, cx, cy, w, h] normalized by img_size
    out = []
    for img_idx in range(raw_targets.shape[0]):
        nlab = int(labels_length[img_idx])
        for k in range(nlab):
            x1, y1, x2, y2, cls = raw_targets[img_idx, k]
            out.append([img_idx, cls,
                        (x1 + x2) / 2.0 / img_size, (y1 + y2) / 2.0 / img_size,
                        (x2 - x1) / img_size, (y2 - y1) / img_size])
    if not out:
        return np.zeros((0, 6), np.float32)
    return np.array(out, np.float32)


def build_targets_np(p_shapes, targets, anchors, na, nl, anchor_t):
    nt = targets.shape[0]
    tcls, tbox, indices, anch = [], [], [], []
    gain = np.ones(7, np.float32)
    ai = np.repeat(np.arange(na, dtype=np.float32).reshape(na, 1), nt, axis=1)
    tgt = np.concatenate((np.tile(targets[None], (na, 1, 1)), ai[:, :, None]), 2)
    g = 0.5
    off = np.array([[0, 0], [1, 0], [0, 1], [-1, 0], [0, -1]], np.float32) * g
    for i in range(nl):
        anchors_i = anchors[i]
        shape = p_shapes[i]                              # (bs, na, ny, nx, no)
        gain[2:6] = np.array(shape, np.float32)[[3, 2, 3, 2]]
        t = tgt * gain
        if nt:
            r = t[:, :, 4:6] / anchors_i[:, None]
            j = np.maximum(r, 1.0 / r).max(2) < anchor_t
            t = t[j]
            gxy = t[:, 2:4]
            gxi = gain[[2, 3]] - gxy
            jk = (gxy % 1.0 < g) & (gxy > 1.0)
            lm = (gxi % 1.0 < g) & (gxi > 1.0)
            jj, kk = jk.T
            ll, mm = lm.T
            jmat = np.stack((np.ones_like(jj), jj, kk, ll, mm))
            t = np.tile(t[None], (5, 1, 1))[jmat]
            offsets = (np.zeros_like(gxy)[None] + off[:, None])[jmat]
        else:
            t = tgt[0]
            offsets = np.zeros((0, 2), np.float32)
        b = t[:, 0].astype(np.int64)
        c = t[:, 1].astype(np.int64)
        gxy = t[:, 2:4]
        gwh = t[:, 4:6]
        gij = (gxy - offsets).astype(np.int64)
        gi = gij[:, 0]
        gj = gij[:, 1]
        a = t[:, 6].astype(np.int64)
        indices.append((b, a, gj, gi))
        tbox.append(np.concatenate((gxy - gij, gwh), 1).astype(np.float32))
        anch.append(anchors_i[a].astype(np.float32))
        tcls.append(c)
    return tcls, tbox, indices, anch


# ----------------------------------------------------------------------------
# YoloV5Loss.forward
# ----------------------------------------------------------------------------
def yolov5_loss(p, raw_targets, labels_length, img_size, anchors):
    cp, cn = smooth_bce(HYP['label_smoothing'])
    targets = get_yolov5_targets_np(raw_targets, labels_length, img_size)
    p_shapes = [tuple(pi.shape) for pi in p]
    na, nl = anchors.shape[1], len(p)
    balance = {3: [4.0, 1.0, 0.4]}.get(nl, [4.0, 1.0, 0.25, 0.06, 0.02])
    tcls, tboxes, indices, anchs = build_targets_np(
        p_shapes, targets, anchors, na, nl, HYP['anchor_t'])

    # fixed compile-time target capacity: each label can match <= na anchors
    # and <= 3 offset cells per level -> shape-static, compiles once.
    bs = p[0].shape[0]
    max_labels = raw_targets.shape[1]
    max_tgt = int(np.ceil(max(1, bs * max_labels * na * 3) / 128.0)) * 128

    lcls = jnp.float32(0.0)
    lbox = jnp.float32(0.0)

    obj_x_parts, obj_y_parts, level_sizes = [], [], []

    for i, pi in enumerate(p):
        b, a, gj, gi = indices[i]
        bsz, na_i, ny, nx, no = pi.shape
        nc = no - 5
        tobj = jnp.zeros((bsz, na_i, ny, nx), jnp.float32)
        n = b.shape[0]
        if n:
            assert n <= max_tgt
            # fixed-size padded index arrays (gather pad: in-bounds 0;
            # scatter pad: out-of-bounds batch -> dropped with mode='drop')
            b_g = np.zeros(max_tgt, np.int32); b_g[:n] = b
            b_s = np.full(max_tgt, bsz, np.int32); b_s[:n] = b
            a_p = np.zeros(max_tgt, np.int32); a_p[:n] = a
            gj_p = np.zeros(max_tgt, np.int32); gj_p[:n] = gj
            gi_p = np.zeros(max_tgt, np.int32); gi_p[:n] = gi

            ps = pi[b_g, a_p, gj_p, gi_p]               # (max_tgt, no) gather (glue)
            pbox_t = ps[:, 0:4].T                       # (4, max_tgt) lane-dense
            pcls_t = ps[:, 5:].T                        # (nc, max_tgt)

            tbox_t = np.zeros((4, max_tgt), np.float32); tbox_t[:, :n] = tboxes[i].T
            anch_t = np.zeros((2, max_tgt), np.float32); anch_t[:, :n] = anchs[i].T
            mask = np.zeros((1, max_tgt), np.float32); mask[0, :n] = 1.0
            tmat_t = np.full((nc, max_tgt), cn, np.float32)
            tmat_t[tcls[i], np.arange(n)] = cp

            lbox_sum, lcls_sum, siou = target_losses_kernel(
                pbox_t, jnp.asarray(tbox_t), jnp.asarray(anch_t),
                jnp.asarray(mask), pcls_t, jnp.asarray(tmat_t), HYP['cls_pw'])

            lbox = lbox + lbox_sum[0, 0] / n
            # tobj[b,a,gj,gi] = (1 - gr) + gr * clamp(iou, 0)  (gr == 1.0);
            # padded rows scatter out of bounds and are dropped.
            # TODO(synk): duplicate (b,a,gj,gi) tuples have an unspecified
            # winner, matching torch advanced-index assignment semantics.
            tobj = tobj.at[b_s, a_p, gj_p, gi_p].set(siou[0], mode='drop')
            if nc > 1:
                lcls = lcls + lcls_sum[0, 0] / (n * nc)

        obj_x_parts.append(pi[..., 4].reshape(-1))
        obj_y_parts.append(tobj.reshape(-1))
        level_sizes.append(int(bsz * na_i * ny * nx))

    # TODO(synk): a tobj-free obj-BCE (sum softplus + per-target correction)
    # would halve HBM traffic but needs dedup of duplicate cells; kept the
    # scatter to preserve the reference's (unspecified) duplicate semantics.
    lobj = fused_obj_bce(obj_x_parts, obj_y_parts, level_sizes,
                         balance, HYP['obj_pw'])

    lbox = lbox * HYP['giou']
    lobj = lobj * HYP['obj']
    lcls = lcls * HYP['cls']
    bs_out = p[-1].shape[0]
    loss = (lbox + lobj + lcls) * bs_out
    return loss, jnp.stack([lbox, lobj, lcls])


# ----------------------------------------------------------------------------
if __name__ == "__main__":
    key = jax.random.PRNGKey(0)
    num_classes = 3
    no = num_classes + 5
    bs = 2
    img_size = 64
    grids = [8, 4, 2]                       # strides 8, 16, 32

    # anchors (pixels, standard yolov5) -> grid units (as stored by Detect)
    anchors_px = np.array([[[10, 13], [16, 30], [33, 23]],
                           [[30, 61], [62, 45], [59, 119]],
                           [[116, 90], [156, 198], [373, 326]]], np.float32)
    strides = np.array([8.0, 16.0, 32.0], np.float32)
    anchors = anchors_px / strides[:, None, None]

    # deterministic detection-head outputs: p[i] = (bs, na, ny, nx, no)
    keys = jax.random.split(key, len(grids))
    p = [jax.random.normal(keys[i], (bs, 3, g, g, no), jnp.float32)
         for i, g in enumerate(grids)]

    # deterministic padded ground-truth boxes [x1, y1, x2, y2, class] (pixels)
    raw_targets = np.zeros((bs, 4, 5), np.float32)
    raw_targets[0, 0] = [10, 10, 26, 30, 0]
    raw_targets[0, 1] = [30, 20, 50, 44, 1]
    raw_targets[0, 2] = [5, 40, 20, 60, 2]
    raw_targets[1, 0] = [12, 8, 40, 36, 1]
    raw_targets[1, 1] = [34, 34, 58, 60, 2]
    labels_length = np.array([3, 2], np.int32)

    loss, loss_items = yolov5_loss(p, raw_targets, labels_length,
                                   img_size, anchors)
    jax.block_until_ready((loss, loss_items))
    print("KERNEL_OK")
</pallas_src>

<mosaic_0001>
module attributes {stable_mosaic.version = 11 : i64} {
  func.func @_target_kernel(%arg0: memref<4x128xf32, #tpu.memory_space<vmem>>, %arg1: memref<4x128xf32, #tpu.memory_space<vmem>>, %arg2: memref<2x128xf32, #tpu.memory_space<vmem>>, %arg3: memref<1x128xf32, #tpu.memory_space<vmem>>, %arg4: memref<3x128xf32, #tpu.memory_space<vmem>>, %arg5: memref<3x128xf32, #tpu.memory_space<vmem>>, %arg6: memref<1x1xf32, #tpu.memory_space<vmem>>, %arg7: memref<1x1xf32, #tpu.memory_space<vmem>>, %arg8: memref<1x128xf32, #tpu.memory_space<vmem>>) attributes {dimension_semantics = [], scalar_prefetch = 0 : i64, scratch_operands = 0 : i64, tpu.core_type = #tpu.core_type<tc>} {
    %c0 = arith.constant 0 : index
    %c0_0 = arith.constant 0 : index
    %0 = vector.load %arg3[%c0, %c0_0] : memref<1x128xf32, #tpu.memory_space<vmem>>, vector<1x128xf32>
    %c0_1 = arith.constant 0 : index
    %c0_2 = arith.constant 0 : index
    %1 = vector.load %arg0[%c0_1, %c0_2] : memref<4x128xf32, #tpu.memory_space<vmem>>, vector<1x128xf32>
    %2 = math.absf %1 : vector<1x128xf32>
    %cst = arith.constant 0.000000e+00 : f32
    %3 = vector.broadcast %cst : f32 to vector<1x128xf32>
    %4 = arith.subf %3, %2 : vector<1x128xf32>
    %5 = math.exp %4 : vector<1x128xf32>
    %cst_3 = arith.constant 1.000000e+00 : f32
    %6 = vector.broadcast %cst_3 : f32 to vector<1x128xf32>
    %7 = arith.addf %6, %5 : vector<1x128xf32>
    %cst_4 = arith.constant 1.000000e+00 : f32
    %8 = vector.broadcast %cst_4 : f32 to vector<1x128xf32>
    %9 = arith.divf %8, %7 : vector<1x128xf32>
    %cst_5 = arith.constant 0.000000e+00 : f32
    %10 = vector.broadcast %cst_5 : f32 to vector<1x128xf32>
    %11 = arith.cmpf oge, %1, %10 : vector<1x128xf32>
    %cst_6 = arith.constant 1.000000e+00 : f32
    %12 = vector.broadcast %cst_6 : f32 to vector<1x128xf32>
    %13 = arith.subf %12, %9 : vector<1x128xf32>
    %14 = arith.select %11, %9, %13 : vector<1x128xi1>, vector<1x128xf32>
    %cst_7 = arith.constant 2.000000e+00 : f32
    %15 = vector.broadcast %cst_7 : f32 to vector<1x128xf32>
    %16 = arith.mulf %14, %15 : vector<1x128xf32>
    %cst_8 = arith.constant 5.000000e-01 : f32
    %17 = vector.broadcast %cst_8 : f32 to vector<1x128xf32>
    %18 = arith.subf %16, %17 : vector<1x128xf32>
    %c1 = arith.constant 1 : index
    %c0_9 = arith.constant 0 : index
    %19 = vector.load %arg0[%c1, %c0_9] : memref<4x128xf32, #tpu.memory_space<vmem>>, vector<1x128xf32>
    %20 = math.absf %19 : vector<1x128xf32>
    %cst_10 = arith.constant 0.000000e+00 : f32
    %21 = vector.broadcast %cst_10 : f32 to vector<1x128xf32>
    %22 = arith.subf %21, %20 : vector<1x128xf32>
    %23 = math.exp %22 : vector<1x128xf32>
    %cst_11 = arith.constant 1.000000e+00 : f32
    %24 = vector.broadcast %cst_11 : f32 to vector<1x128xf32>
    %25 = arith.addf %24, %23 : vector<1x128xf32>
    %cst_12 = arith.constant 1.000000e+00 : f32
    %26 = vector.broadcast %cst_12 : f32 to vector<1x128xf32>
    %27 = arith.divf %26, %25 : vector<1x128xf32>
    %cst_13 = arith.constant 0.000000e+00 : f32
    %28 = vector.broadcast %cst_13 : f32 to vector<1x128xf32>
    %29 = arith.cmpf oge, %19, %28 : vector<1x128xf32>
    %cst_14 = arith.constant 1.000000e+00 : f32
    %30 = vector.broadcast %cst_14 : f32 to vector<1x128xf32>
    %31 = arith.subf %30, %27 : vector<1x128xf32>
    %32 = arith.select %29, %27, %31 : vector<1x128xi1>, vector<1x128xf32>
    %cst_15 = arith.constant 2.000000e+00 : f32
    %33 = vector.broadcast %cst_15 : f32 to vector<1x128xf32>
    %34 = arith.mulf %32, %33 : vector<1x128xf32>
    %cst_16 = arith.constant 5.000000e-01 : f32
    %35 = vector.broadcast %cst_16 : f32 to vector<1x128xf32>
    %36 = arith.subf %34, %35 : vector<1x128xf32>
    %c2 = arith.constant 2 : index
    %c0_17 = arith.constant 0 : index
    %37 = vector.load %arg0[%c2, %c0_17] : memref<4x128xf32, #tpu.memory_space<vmem>>, vector<1x128xf32>
    %38 = math.absf %37 : vector<1x128xf32>
    %cst_18 = arith.constant 0.000000e+00 : f32
    %39 = vector.broadcast %cst_18 : f32 to vector<1x128xf32>
    %40 = arith.subf %39, %38 : vector<1x128xf32>
    %41 = math.exp %40 : vector<1x128xf32>
    %cst_19 = arith.constant 1.000000e+00 : f32
    %42 = vector.broadcast %cst_19 : f32 to vector<1x128xf32>
    %43 = arith.addf %42, %41 : vector<1x128xf32>
    %cst_20 = arith.constant 1.000000e+00 : f32
    %44 = vector.broadcast %cst_20 : f32 to vector<1x128xf32>
    %45 = arith.divf %44, %43 : vector<1x128xf32>
    %cst_21 = arith.constant 0.000000e+00 : f32
    %46 = vector.broadcast %cst_21 : f32 to vector<1x128xf32>
    %47 = arith.cmpf oge, %37, %46 : vector<1x128xf32>
    %cst_22 = arith.constant 1.000000e+00 : f32
    %48 = vector.broadcast %cst_22 : f32 to vector<1x128xf32>
    %49 = arith.subf %48, %45 : vector<1x128xf32>
    %50 = arith.select %47, %45, %49 : vector<1x128xi1>, vector<1x128xf32>
    %cst_23 = arith.constant 2.000000e+00 : f32
    %51 = vector.broadcast %cst_23 : f32 to vector<1x128xf32>
    %52 = arith.mulf %50, %51 : vector<1x128xf32>
    %53 = arith.mulf %52, %52 : vector<1x128xf32>
    %c0_24 = arith.constant 0 : index
    %c0_25 = arith.constant 0 : index
    %54 = vector.load %arg2[%c0_24, %c0_25] : memref<2x128xf32, #tpu.memory_space<vmem>>, vector<1x128xf32>
    %55 = arith.mulf %53, %54 : vector<1x128xf32>
    %c3 = arith.constant 3 : index
    %c0_26 = arith.constant 0 : index
    %56 = vector.load %arg0[%c3, %c0_26] : memref<4x128xf32, #tpu.memory_space<vmem>>, vector<1x128xf32>
    %57 = math.absf %56 : vector<1x128xf32>
    %cst_27 = arith.constant 0.000000e+00 : f32
    %58 = vector.broadcast %cst_27 : f32 to vector<1x128xf32>
    %59 = arith.subf %58, %57 : vector<1x128xf32>
    %60 = math.exp %59 : vector<1x128xf32>
    %cst_28 = arith.constant 1.000000e+00 : f32
    %61 = vector.broadcast %cst_28 : f32 to vector<1x128xf32>
    %62 = arith.addf %61, %60 : vector<1x128xf32>
    %cst_29 = arith.constant 1.000000e+00 : f32
    %63 = vector.broadcast %cst_29 : f32 to vector<1x128xf32>
    %64 = arith.divf %63, %62 : vector<1x128xf32>
    %cst_30 = arith.constant 0.000000e+00 : f32
    %65 = vector.broadcast %cst_30 : f32 to vector<1x128xf32>
    %66 = arith.cmpf oge, %56, %65 : vector<1x128xf32>
    %cst_31 = arith.constant 1.000000e+00 : f32
    %67 = vector.broadcast %cst_31 : f32 to vector<1x128xf32>
    %68 = arith.subf %67, %64 : vector<1x128xf32>
    %69 = arith.select %66, %64, %68 : vector<1x128xi1>, vector<1x128xf32>
    %cst_32 = arith.constant 2.000000e+00 : f32
    %70 = vector.broadcast %cst_32 : f32 to vector<1x128xf32>
    %71 = arith.mulf %69, %70 : vector<1x128xf32>
    %72 = arith.mulf %71, %71 : vector<1x128xf32>
    %c1_33 = arith.constant 1 : index
    %c0_34 = arith.constant 0 : index
    %73 = vector.load %arg2[%c1_33, %c0_34] : memref<2x128xf32, #tpu.memory_space<vmem>>, vector<1x128xf32>
    %74 = arith.mulf %72, %73 : vector<1x128xf32>
    %c0_35 = arith.constant 0 : index
    %c0_36 = arith.constant 0 : index
    %75 = vector.load %arg1[%c0_35, %c0_36] : memref<4x128xf32, #tpu.memory_space<vmem>>, vector<1x128xf32>
    %c1_37 = arith.constant 1 : index
    %c0_38 = arith.constant 0 : index
    %76 = vector.load %arg1[%c1_37, %c0_38] : memref<4x128xf32, #tpu.memory_space<vmem>>, vector<1x128xf32>
    %c2_39 = arith.constant 2 : index
    %c0_40 = arith.constant 0 : index
    %77 = vector.load %arg1[%c2_39, %c0_40] : memref<4x128xf32, #tpu.memory_space<vmem>>, vector<1x128xf32>
    %c3_41 = arith.constant 3 : index
    %c0_42 = arith.constant 0 : index
    %78 = vector.load %arg1[%c3_41, %c0_42] : memref<4x128xf32, #tpu.memory_space<vmem>>, vector<1x128xf32>
    %cst_43 = arith.constant 5.000000e-01 : f32
    %79 = vector.broadcast %cst_43 : f32 to vector<1x128xf32>
    %80 = arith.mulf %55, %79 : vector<1x128xf32>
    %81 = arith.subf %18, %80 : vector<1x128xf32>
    %cst_44 = arith.constant 5.000000e-01 : f32
    %82 = vector.broadcast %cst_44 : f32 to vector<1x128xf32>
    %83 = arith.mulf %55, %82 : vector<1x128xf32>
    %84 = arith.addf %18, %83 : vector<1x128xf32>
    %cst_45 = arith.constant 5.000000e-01 : f32
    %85 = vector.broadcast %cst_45 : f32 to vector<1x128xf32>
    %86 = arith.mulf %74, %85 : vector<1x128xf32>
    %87 = arith.subf %36, %86 : vector<1x128xf32>
    %cst_46 = arith.constant 5.000000e-01 : f32
    %88 = vector.broadcast %cst_46 : f32 to vector<1x128xf32>
    %89 = arith.mulf %74, %88 : vector<1x128xf32>
    %90 = arith.addf %36, %89 : vector<1x128xf32>
    %cst_47 = arith.constant 5.000000e-01 : f32
    %91 = vector.broadcast %cst_47 : f32 to vector<1x128xf32>
    %92 = arith.mulf %77, %91 : vector<1x128xf32>
    %93 = arith.subf %75, %92 : vector<1x128xf32>
    %cst_48 = arith.constant 5.000000e-01 : f32
    %94 = vector.broadcast %cst_48 : f32 to vector<1x128xf32>
    %95 = arith.mulf %77, %94 : vector<1x128xf32>
    %96 = arith.addf %75, %95 : vector<1x128xf32>
    %cst_49 = arith.constant 5.000000e-01 : f32
    %97 = vector.broadcast %cst_49 : f32 to vector<1x128xf32>
    %98 = arith.mulf %78, %97 : vector<1x128xf32>
    %99 = arith.subf %76, %98 : vector<1x128xf32>
    %cst_50 = arith.constant 5.000000e-01 : f32
    %100 = vector.broadcast %cst_50 : f32 to vector<1x128xf32>
    %101 = arith.mulf %78, %100 : vector<1x128xf32>
    %102 = arith.addf %76, %101 : vector<1x128xf32>
    %103 = arith.minimumf %84, %96 : vector<1x128xf32>
    %104 = arith.maximumf %81, %93 : vector<1x128xf32>
    %105 = arith.subf %103, %104 : vector<1x128xf32>
    %cst_51 = arith.constant 0.000000e+00 : f32
    %106 = vector.broadcast %cst_51 : f32 to vector<1x128xf32>
    %107 = arith.maximumf %105, %106 : vector<1x128xf32>
    %108 = arith.minimumf %90, %102 : vector<1x128xf32>
    %109 = arith.maximumf %87, %99 : vector<1x128xf32>
    %110 = arith.subf %108, %109 : vector<1x128xf32>
    %cst_52 = arith.constant 0.000000e+00 : f32
    %111 = vector.broadcast %cst_52 : f32 to vector<1x128xf32>
    %112 = arith.maximumf %110, %111 : vector<1x128xf32>
    %113 = arith.mulf %107, %112 : vector<1x128xf32>
    %114 = arith.subf %84, %81 : vector<1x128xf32>
    %115 = arith.subf %90, %87 : vector<1x128xf32>
    %cst_53 = arith.constant 1.000000e-07 : f32
    %116 = vector.broadcast %cst_53 : f32 to vector<1x128xf32>
    %117 = arith.addf %115, %116 : vector<1x128xf32>
    %118 = arith.subf %96, %93 : vector<1x128xf32>
    %119 = arith.subf %102, %99 : vector<1x128xf32>
    %cst_54 = arith.constant 1.000000e-07 : f32
    %120 = vector.broadcast %cst_54 : f32 to vector<1x128xf32>
    %121 = arith.addf %119, %120 : vector<1x128xf32>
    %122 = arith.mulf %114, %117 : vector<1x128xf32>
    %123 = arith.mulf %118, %121 : vector<1x128xf32>
    %124 = arith.addf %122, %123 : vector<1x128xf32>
    %125 = arith.subf %124, %113 : vector<1x128xf32>
    %cst_55 = arith.constant 1.000000e-07 : f32
    %126 = vector.broadcast %cst_55 : f32 to vector<1x128xf32>
    %127 = arith.addf %125, %126 : vector<1x128xf32>
    %128 = arith.divf %113, %127 : vector<1x128xf32>
    %129 = arith.maximumf %84, %96 : vector<1x128xf32>
    %130 = arith.minimumf %81, %93 : vector<1x128xf32>
    %131 = arith.subf %129, %130 : vector<1x128xf32>
    %132 = arith.maximumf %90, %102 : vector<1x128xf32>
    %133 = arith.minimumf %87, %99 : vector<1x128xf32>
    %134 = arith.subf %132, %133 : vector<1x128xf32>
    %135 = arith.mulf %131, %131 : vector<1x128xf32>
    %136 = arith.mulf %134, %134 : vector<1x128xf32>
    %137 = arith.addf %135, %136 : vector<1x128xf32>
    %cst_56 = arith.constant 1.000000e-07 : f32
    %138 = vector.broadcast %cst_56 : f32 to vector<1x128xf32>
    %139 = arith.addf %137, %138 : vector<1x128xf32>
    %140 = arith.addf %93, %96 : vector<1x128xf32>
    %141 = arith.subf %140, %81 : vector<1x128xf32>
    %142 = arith.subf %141, %84 : vector<1x128xf32>
    %143 = arith.mulf %142, %142 : vector<1x128xf32>
    %144 = arith.addf %99, %102 : vector<1x128xf32>
    %145 = arith.subf %144, %87 : vector<1x128xf32>
    %146 = arith.subf %145, %90 : vector<1x128xf32>
    %147 = arith.mulf %146, %146 : vector<1x128xf32>
    %148 = arith.addf %143, %147 : vector<1x128xf32>
    %cst_57 = arith.constant 2.500000e-01 : f32
    %149 = vector.broadcast %cst_57 : f32 to vector<1x128xf32>
    %150 = arith.mulf %148, %149 : vector<1x128xf32>
    %151 = arith.mulf %118, %117 : vector<1x128xf32>
    %152 = arith.mulf %114, %121 : vector<1x128xf32>
    %153 = arith.subf %151, %152 : vector<1x128xf32>
    %154 = arith.mulf %117, %121 : vector<1x128xf32>
    %155 = arith.mulf %114, %118 : vector<1x128xf32>
    %156 = arith.addf %154, %155 : vector<1x128xf32>
    %157 = arith.divf %153, %156 : vector<1x128xf32>
    %cst_58 = arith.constant 0.000000e+00 : f32
    %158 = vector.broadcast %cst_58 : f32 to vector<1x128xf32>
    %159 = arith.cmpf olt, %157, %158 : vector<1x128xf32>
    %cst_59 = arith.constant -1.000000e+00 : f32
    %cst_60 = arith.constant 1.000000e+00 : f32
    %160 = vector.broadcast %cst_59 : f32 to vector<1x128xf32>
    %161 = vector.broadcast %cst_60 : f32 to vector<1x128xf32>
    %162 = arith.select %159, %160, %161 : vector<1x128xi1>, vector<1x128xf32>
    %163 = math.absf %157 : vector<1x128xf32>
    %cst_61 = arith.constant 2.41421366 : f32
    %164 = vector.broadcast %cst_61 : f32 to vector<1x128xf32>
    %165 = arith.cmpf ogt, %163, %164 : vector<1x128xf32>
    %cst_62 = arith.constant 0.414213568 : f32
    %166 = vector.broadcast %cst_62 : f32 to vector<1x128xf32>
    %167 = arith.cmpf ogt, %163, %166 : vector<1x128xf32>
    %cst_63 = arith.constant 0.785398185 : f32
    %cst_64 = arith.constant 0.000000e+00 : f32
    %168 = vector.broadcast %cst_63 : f32 to vector<1x128xf32>
    %169 = vector.broadcast %cst_64 : f32 to vector<1x128xf32>
    %170 = arith.select %167, %168, %169 : vector<1x128xi1>, vector<1x128xf32>
    %cst_65 = arith.constant 1.57079637 : f32
    %171 = vector.broadcast %cst_65 : f32 to vector<1x128xf32>
    %172 = arith.select %165, %171, %170 : vector<1x128xi1>, vector<1x128xf32>
    %cst_66 = arith.constant 1.000000e+00 : f32
    %173 = vector.broadcast %cst_66 : f32 to vector<1x128xf32>
    %174 = arith.select %165, %163, %173 : vector<1x128xi1>, vector<1x128xf32>
    %cst_67 = arith.constant -1.000000e+00 : f32
    %175 = vector.broadcast %cst_67 : f32 to vector<1x128xf32>
    %176 = arith.divf %175, %174 : vector<1x128xf32>
    %cst_68 = arith.constant 1.000000e+00 : f32
    %177 = vector.broadcast %cst_68 : f32 to vector<1x128xf32>
    %178 = arith.subf %163, %177 : vector<1x128xf32>
    %cst_69 = arith.constant 1.000000e+00 : f32
    %179 = vector.broadcast %cst_69 : f32 to vector<1x128xf32>
    %180 = arith.addf %163, %179 : vector<1x128xf32>
    %181 = arith.divf %178, %180 : vector<1x128xf32>
    %182 = arith.select %167, %181, %163 : vector<1x128xi1>, vector<1x128xf32>
    %183 = arith.select %165, %176, %182 : vector<1x128xi1>, vector<1x128xf32>
    %184 = arith.mulf %183, %183 : vector<1x128xf32>
    %cst_70 = arith.constant 0.0805374458 : f32
    %185 = vector.broadcast %cst_70 : f32 to vector<1x128xf32>
    %186 = arith.mulf %185, %184 : vector<1x128xf32>
    %cst_71 = arith.constant 0.138776854 : f32
    %187 = vector.broadcast %cst_71 : f32 to vector<1x128xf32>
    %188 = arith.subf %186, %187 : vector<1x128xf32>
    %189 = arith.mulf %188, %184 : vector<1x128xf32>
    %cst_72 = arith.constant 0.199777111 : f32
    %190 = vector.broadcast %cst_72 : f32 to vector<1x128xf32>
    %191 = arith.addf %189, %190 : vector<1x128xf32>
    %192 = arith.mulf %191, %184 : vector<1x128xf32>
    %cst_73 = arith.constant 0.333329499 : f32
    %193 = vector.broadcast %cst_73 : f32 to vector<1x128xf32>
    %194 = arith.subf %192, %193 : vector<1x128xf32>
    %195 = arith.mulf %194, %184 : vector<1x128xf32>
    %196 = arith.mulf %195, %183 : vector<1x128xf32>
    %197 = arith.addf %196, %183 : vector<1x128xf32>
    %198 = arith.addf %172, %197 : vector<1x128xf32>
    %199 = arith.mulf %162, %198 : vector<1x128xf32>
    %cst_74 = arith.constant 0.405284733 : f32
    %200 = vector.broadcast %cst_74 : f32 to vector<1x128xf32>
    %201 = arith.mulf %200, %199 : vector<1x128xf32>
    %202 = arith.mulf %201, %199 : vector<1x128xf32>
    %203 = arith.subf %202, %128 : vector<1x128xf32>
    %cst_75 = arith.constant 1.00000012 : f32
    %204 = vector.broadcast %cst_75 : f32 to vector<1x128xf32>
    %205 = arith.addf %203, %204 : vector<1x128xf32>
    %206 = arith.divf %202, %205 : vector<1x128xf32>
    %207 = arith.divf %150, %139 : vector<1x128xf32>
    %208 = arith.mulf %202, %206 : vector<1x128xf32>
    %209 = arith.addf %207, %208 : vector<1x128xf32>
    %210 = arith.subf %128, %209 : vector<1x128xf32>
    %cst_76 = arith.constant 1.000000e+00 : f32
    %211 = vector.broadcast %cst_76 : f32 to vector<1x128xf32>
    %212 = arith.subf %211, %210 : vector<1x128xf32>
    %213 = arith.mulf %212, %0 : vector<1x128xf32>
    %214 = vector.shape_cast %213 : vector<1x128xf32> to vector<1x1x128xf32>
    %cst_77 = arith.constant dense<0.000000e+00> : vector<1xf32>
    %215 = vector.multi_reduction <add>, %214, %cst_77 [1, 2] : vector<1x1x128xf32> to vector<1xf32>
    %216 = vector.shape_cast %215 : vector<1xf32> to vector<1x1x1xf32>
    %217 = vector.extract %216[0, 0, 0] : f32 from vector<1x1x1xf32>
    %218 = vector.broadcast %217 : f32 to vector<1x1xf32>
    %c0_78 = arith.constant 0 : index
    %c0_79 = arith.constant 0 : index
    %219 = vector.load %arg6[%c0_78, %c0_79] : memref<1x1xf32, #tpu.memory_space<vmem>>, vector<1x1xf32>
    tpu.vector_store %arg6[%c0_78, %c0_79], %218 {strides = array<i32>} : memref<1x1xf32, #tpu.memory_space<vmem>>, vector<1x1xf32>,
    %c0_80 = arith.constant 0 : index
    %c0_81 = arith.constant 0 : index
    %220 = vector.load %arg4[%c0_80, %c0_81] : memref<3x128xf32, #tpu.memory_space<vmem>>, vector<3x128xf32>
    %c0_82 = arith.constant 0 : index
    %c0_83 = arith.constant 0 : index
    %221 = vector.load %arg5[%c0_82, %c0_83] : memref<3x128xf32, #tpu.memory_space<vmem>>, vector<3x128xf32>
    %222 = math.absf %220 : vector<3x128xf32>
    %cst_84 = arith.constant 0.000000e+00 : f32
    %223 = vector.broadcast %cst_84 : f32 to vector<3x128xf32>
    %224 = arith.subf %223, %222 : vector<3x128xf32>
    %225 = math.exp %224 : vector<3x128xf32>
    %cst_85 = arith.constant 1.000000e+00 : f32
    %226 = vector.broadcast %cst_85 : f32 to vector<3x128xf32>
    %227 = arith.addf %226, %225 : vector<3x128xf32>
    %228 = math.log %227 : vector<3x128xf32>
    %cst_86 = arith.constant 1.000000e+00 : f32
    %229 = vector.broadcast %cst_86 : f32 to vector<3x128xf32>
    %230 = arith.mulf %229, %221 : vector<3x128xf32>
    %cst_87 = arith.constant 0.000000e+00 : f32
    %231 = vector.broadcast %cst_87 : f32 to vector<3x128xf32>
    %232 = arith.subf %231, %220 : vector<3x128xf32>
    %cst_88 = arith.constant 0.000000e+00 : f32
    %233 = vector.broadcast %cst_88 : f32 to vector<3x128xf32>
    %234 = arith.maximumf %232, %233 : vector<3x128xf32>
    %235 = arith.addf %234, %228 : vector<3x128xf32>
    %236 = arith.mulf %230, %235 : vector<3x128xf32>
    %cst_89 = arith.constant 1.000000e+00 : f32
    %237 = vector.broadcast %cst_89 : f32 to vector<3x128xf32>
    %238 = arith.subf %237, %221 : vector<3x128xf32>
    %cst_90 = arith.constant 0.000000e+00 : f32
    %239 = vector.broadcast %cst_90 : f32 to vector<3x128xf32>
    %240 = arith.maximumf %220, %239 : vector<3x128xf32>
    %241 = arith.addf %240, %228 : vector<3x128xf32>
    %242 = arith.mulf %238, %241 : vector<3x128xf32>
    %243 = arith.addf %236, %242 : vector<3x128xf32>
    %244 = vector.broadcast %0 : vector<1x128xf32> to vector<3x128xf32>
    %245 = arith.mulf %243, %244 : vector<3x128xf32>
    %246 = vector.shape_cast %245 : vector<3x128xf32> to vector<1x3x128xf32>
    %cst_91 = arith.constant dense<0.000000e+00> : vector<1xf32>
    %247 = vector.multi_reduction <add>, %246, %cst_91 [1, 2] : vector<1x3x128xf32> to vector<1xf32>
    %248 = vector.shape_cast %247 : vector<1xf32> to vector<1x1x1xf32>
    %249 = vector.extract %248[0, 0, 0] : f32 from vector<1x1x1xf32>
    %250 = vector.broadcast %249 : f32 to vector<1x1xf32>
    %c0_92 = arith.constant 0 : index
    %c0_93 = arith.constant 0 : index
    %251 = vector.load %arg7[%c0_92, %c0_93] : memref<1x1xf32, #tpu.memory_space<vmem>>, vector<1x1xf32>
    tpu.vector_store %arg7[%c0_92, %c0_93], %250 {strides = array<i32>} : memref<1x1xf32, #tpu.memory_space<vmem>>, vector<1x1xf32>,
    %cst_94 = arith.constant 0.000000e+00 : f32
    %252 = vector.broadcast %cst_94 : f32 to vector<1x128xf32>
    %253 = arith.maximumf %210, %252 : vector<1x128xf32>
    %254 = arith.mulf %253, %0 : vector<1x128xf32>
    %c0_95 = arith.constant 0 : index
    %c0_96 = arith.constant 0 : index
    %255 = vector.load %arg8[%c0_95, %c0_96] : memref<1x128xf32, #tpu.memory_space<vmem>>, vector<1x128xf32>
    tpu.vector_store %arg8[%c0_95, %c0_96], %254 {strides = array<i32>} : memref<1x128xf32, #tpu.memory_space<vmem>>, vector<1x128xf32>,
    return
  }
}

</mosaic_0001>

<llo_original>
// kernel: tpu_custom_call.1
$region0: #{tpu_custom_call.1}
  #allocation0 [shape = 'u32[]', space=smem, size = 0x4, offset = 0x4, fixed_abs, tag = 'smem constant byte address 0x4 - core index']
  #allocation1 [shape = 'u32[144,128]{1,0:T(1,128)}', space=vmem, size = 0x12000, scoped, tag = 'internal scratch']
  %s0 = inlined_call_operand.hbm [shape: f32[4,128], index: 0, kind: input, shape index: {}]
  %s1 = inlined_call_operand.hbm [shape: f32[4,128], index: 1, kind: input, shape index: {}]
  %s2 = inlined_call_operand.vmem [shape: f32[2,128], index: 2, kind: input, shape index: {}]
  %s3 = inlined_call_operand.vmem [shape: f32[1,128], index: 3, kind: input, shape index: {}]
  %s4 = inlined_call_operand.vmem [shape: f32[3,128], index: 4, kind: input, shape index: {}]
  %s5 = inlined_call_operand.vmem [shape: f32[3,128], index: 5, kind: input, shape index: {}]
  %s6 = inlined_call_operand.hbm [shape: f32[1,1], index: 6, kind: output, shape index: {0}]
  %s7 = inlined_call_operand.hbm [shape: f32[1,1], index: 7, kind: output, shape index: {1}]
  %s8 = inlined_call_operand.hbm [shape: f32[1,128], index: 8, kind: output, shape index: {2}]
  %9 = xla_tuple %s6, %s7, %s8
  %s10 = sld [smem:[#allocation0]]
  $region58: #{tpu_custom_call.1} parent=0
    _
  %s12 = ssub.s32 1, %s10
  %s13 = scalar_select 0, %s12, %s10
  $region1: #{tpu_custom_call.1} parent=0
    #allocation2 [shape = 'u8[2048]{0}', space=vmem, size = 0x800, scoped, tag = 'input window, operand 0, single buffered']
    #allocation3 [shape = 's32[1]{0}', space=sflag, size = 0x4, scoped, tag = 'scoped memory for tpu_custom_call.1']
    #allocation4 [shape = 's32[1]{0}', space=sflag, size = 0x4, scoped, tag = 'scoped memory for tpu_custom_call.1']
    #allocation5 [shape = 'u8[2048]{0}', space=vmem, size = 0x800, scoped, tag = 'input window, operand 1, single buffered']
    #allocation6 [shape = 's32[1]{0}', space=sflag, size = 0x4, scoped, tag = 'scoped memory for tpu_custom_call.1']
    #allocation7 [shape = 'u8[512]{0}', space=vmem, size = 0x400, scoped, tag = 'output window, operand 0, single buffered']
    #allocation8 [shape = 'u8[512]{0}', space=vmem, size = 0x400, scoped, tag = 'output window, operand 1, single buffered']
    #allocation9 [shape = 's32[1]{0}', space=sflag, size = 0x4, scoped, tag = 'scoped memory for tpu_custom_call.1']
    #allocation10 [shape = 'u8[512]{0}', space=vmem, size = 0x400, scoped, tag = 'output window, operand 2, single buffered']
    %14 = vsyncpa [#allocation3], 0
    %15 = vsyncpa [#allocation6], 0
    %16 = vsyncpa [#allocation4], 0
    %17 = vsyncpa [#allocation9], 0
    // Predicated region
    $region2: #{tpu_custom_call.1} parent=1 // pred_check
      _
    $region3: #{tpu_custom_call.1} parent=1 // pred_check_branch
      %19 = sbr.rel (0) target = $region5
    $region4: #{tpu_custom_call.1} parent=1 // pred_region
      %s21 = ssub.s32 64, 64
      %22 = vsyncadd [#allocation3], %s21
      %s24 = sshll.u32 [#allocation2], 4
      %s25 = int_to_ptr.vmem [resolvable:$true] %s24
      %27 = dma.hbm_to_vmem [thread:$0]  %s0, 64, %s25, [#allocation3]
    $region5: #{tpu_custom_call.1} parent=1 // pred_fallthru
      _
    // Predicated region
    $region6: #{tpu_custom_call.1} parent=1 // pred_check
      _
    $region7: #{tpu_custom_call.1} parent=1 // pred_check_branch
      %29 = sbr.rel (0) target = $region9
    $region8: #{tpu_custom_call.1} parent=1 // pred_region
      %s31 = ssub.s32 64, 64
      %32 = vsyncadd [#allocation6], %s31
      %s34 = sshll.u32 [#allocation5], 4
      %s35 = int_to_ptr.vmem [resolvable:$true] %s34
      %37 = dma.hbm_to_vmem [thread:$0]  %s1, 64, %s35, [#allocation6]
    $region9: #{tpu_custom_call.1} parent=1 // pred_fallthru
      _
    // Predicated region
    $region10: #{tpu_custom_call.1} parent=1 // pred_check
      _
    $region11: #{tpu_custom_call.1} parent=1 // pred_check_branch
      %39 = sbr.rel (0) target = $region13
    $region12: #{tpu_custom_call.1} parent=1 // pred_region
      _
    $region13: #{tpu_custom_call.1} parent=1 // pred_fallthru
      _
    // Predicated region
    $region14: #{tpu_custom_call.1} parent=1 // pred_check
      _
    $region15: #{tpu_custom_call.1} parent=1 // pred_check_branch
      %41 = sbr.rel (0) target = $region17
    $region16: #{tpu_custom_call.1} parent=1 // pred_region
      _
    $region17: #{tpu_custom_call.1} parent=1 // pred_fallthru
      _
    // Predicated region
    $region18: #{tpu_custom_call.1} parent=1 // pred_check
      _
    $region19: #{tpu_custom_call.1} parent=1 // pred_check_branch
      %43 = sbr.rel (0) target = $region21
    $region20: #{tpu_custom_call.1} parent=1 // pred_region
      _
    $region21: #{tpu_custom_call.1} parent=1 // pred_fallthru
      _
    // Predicated region
    $region22: #{tpu_custom_call.1} parent=1 // pred_check
      _
    $region23: #{tpu_custom_call.1} parent=1 // pred_check_branch
      %45 = sbr.rel (0) target = $region25
    $region24: #{tpu_custom_call.1} parent=1 // pred_region
      _
    $region25: #{tpu_custom_call.1} parent=1 // pred_fallthru
      _
    // Predicated region
    $region26: #{tpu_custom_call.1} parent=1 // pred_check
      _
    $region27: #{tpu_custom_call.1} parent=1 // pred_check_branch
      %47 = sbr.rel (0) target = $region29
    $region28: #{tpu_custom_call.1} parent=1 // pred_region
      %48 = dma.done [#allocation3], 64
    $region29: #{tpu_custom_call.1} parent=1 // pred_fallthru
      _
    // Predicated region
    $region30: #{tpu_custom_call.1} parent=1 // pred_check
      _
    $region31: #{tpu_custom_call.1} parent=1 // pred_check_branch
      %50 = sbr.rel (0) target = $region33
    $region32: #{tpu_custom_call.1} parent=1 // pred_region
      %51 = dma.done [#allocation6], 64
    $region33: #{tpu_custom_call.1} parent=1 // pred_fallthru
      _
    %v52 = vld [vmem:[%s3] sm:$0x1]
    %v53 = vld [vmem:[#allocation2] sm:$0x1]
    %v54 = vand.u32 2147483647, %v53
    %v55 = vsub.f32 0.0, %v54
    %v56 = vmul.f32 %v55, 1.442695
    %v57 = vpow.pop %v56
    %v58 = vadd.f32 %v57, 1.0
    %v59 = vrcp.pop %v58
    %v60 = vmul.f32 1.0, %v59
    %vm61 = vcmp.ge.f32.partialorder %v53, 0.0
    %v62 = vsub.f32 1.0, %v60
    %v63 = vsel %vm61, %v60, %v62
    %v64 = vmul.f32 %v63, 2.0
    %v65 = vsub.f32 %v64, 0.5
    %v66 = vld [vmem:[#allocation2 + $0x1] sm:$0x1]
    %v67 = vand.u32 2147483647, %v66
    %v68 = vsub.f32 0.0, %v67
    %v69 = vmul.f32 %v68, 1.442695
    %v70 = vpow.pop %v69
    %v71 = vadd.f32 %v70, 1.0
    %v72 = vrcp.pop %v71
    %v73 = vmul.f32 1.0, %v72
    %vm74 = vcmp.ge.f32.partialorder %v66, 0.0
    %v75 = vsub.f32 1.0, %v73
    %v76 = vsel %vm74, %v73, %v75
    %v77 = vmul.f32 %v76, 2.0
    %v78 = vsub.f32 %v77, 0.5
    %v79 = vld [vmem:[#allocation2 + $0x2] sm:$0x1]
    %v80 = vand.u32 2147483647, %v79
    %v81 = vsub.f32 0.0, %v80
    %v82 = vmul.f32 %v81, 1.442695
    %v83 = vpow.pop %v82
    %v84 = vadd.f32 %v83, 1.0
    %v85 = vrcp.pop %v84
    %v86 = vmul.f32 1.0, %v85
    %vm87 = vcmp.ge.f32.partialorder %v79, 0.0
    %v88 = vsub.f32 1.0, %v86
    %v89 = vsel %vm87, %v86, %v88
    %v90 = vmul.f32 %v89, 2.0
    %v91 = vmul.f32 %v90, %v90
    %v92 = vld [vmem:[%s2] sm:$0x1]
    %v93 = vmul.f32 %v91, %v92
    %v94 = vld [vmem:[#allocation2 + $0x3] sm:$0x1]
    %v95 = vand.u32 2147483647, %v94
    %v96 = vsub.f32 0.0, %v95
    %v97 = vmul.f32 %v96, 1.442695
    %v98 = vpow.pop %v97
    %v99 = vadd.f32 %v98, 1.0
    %v100 = vrcp.pop %v99
    %v101 = vmul.f32 1.0, %v100
    %vm102 = vcmp.ge.f32.partialorder %v94, 0.0
    %v103 = vsub.f32 1.0, %v101
    %v104 = vsel %vm102, %v101, %v103
    %v105 = vmul.f32 %v104, 2.0
    %v106 = vmul.f32 %v105, %v105
    %v107 = vld [vmem:[%s2 + $0x1] sm:$0x1]
    %v108 = vmul.f32 %v106, %v107
    %v109 = vld [vmem:[#allocation5] sm:$0x1]
    %v110 = vld [vmem:[#allocation5 + $0x1] sm:$0x1]
    %v111 = vld [vmem:[#allocation5 + $0x2] sm:$0x1]
    %v112 = vld [vmem:[#allocation5 + $0x3] sm:$0x1]
    %v113 = vmul.f32 %v93, 0.5
    %v114 = vsub.f32 %v65, %v113
    %v115 = vadd.f32 %v65, %v113
    %v116 = vmul.f32 %v108, 0.5
    %v117 = vsub.f32 %v78, %v116
    %v118 = vadd.f32 %v78, %v116
    %v119 = vmul.f32 %v111, 0.5
    %v120 = vsub.f32 %v109, %v119
    %v121 = vadd.f32 %v109, %v119
    %v122 = vmul.f32 %v112, 0.5
    %v123 = vsub.f32 %v110, %v122
    %v124 = vadd.f32 %v110, %v122
    %v125 = vmin.f32 %v115, %v121
    %v126 = vmax.f32 %v114, %v120
    %v127 = vsub.f32 %v125, %v126
    %v128 = vmax.f32 %v127, 0.0
    %v129 = vmin.f32 %v118, %v124
    %v130 = vmax.f32 %v117, %v123
    %v131 = vsub.f32 %v129, %v130
    %v132 = vmax.f32 %v131, 0.0
    %v133 = vmul.f32 %v128, %v132
    %v134 = vsub.f32 %v115, %v114
    %v135 = vsub.f32 %v118, %v117
    %v136 = vadd.f32 %v135, 1e-07
    %v137 = vsub.f32 %v121, %v120
    %v138 = vsub.f32 %v124, %v123
    %v139 = vadd.f32 %v138, 1e-07
    %v140 = vmul.f32 %v134, %v136
    %v141 = vmul.f32 %v137, %v139
    %v142 = vadd.f32 %v140, %v141
    %v143 = vsub.f32 %v142, %v133
    %v144 = vadd.f32 %v143, 1e-07
    %v145 = vrcp.pop %v144
    %v146 = vmul.f32 %v133, %v145
    %v147 = vmax.f32 %v115, %v121
    %v148 = vmin.f32 %v114, %v120
    %v149 = vsub.f32 %v147, %v148
    %v150 = vmax.f32 %v118, %v124
    %v151 = vmin.f32 %v117, %v123
    %v152 = vsub.f32 %v150, %v151
    %v153 = vmul.f32 %v149, %v149
    %v154 = vmul.f32 %v152, %v152
    %v155 = vadd.f32 %v153, %v154
    %v156 = vadd.f32 %v155, 1e-07
    %v157 = vadd.f32 %v120, %v121
    %v158 = vsub.f32 %v157, %v114
    %v159 = vsub.f32 %v158, %v115
    %v160 = vmul.f32 %v159, %v159
    %v161 = vadd.f32 %v123, %v124
    %v162 = vsub.f32 %v161, %v117
    %v163 = vsub.f32 %v162, %v118
    %v164 = vmul.f32 %v163, %v163
    %v165 = vadd.f32 %v160, %v164
    %v166 = vmul.f32 %v165, 0.25
    %v167 = vmul.f32 %v137, %v136
    %v168 = vmul.f32 %v134, %v139
    %v169 = vsub.f32 %v167, %v168
    %v170 = vmul.f32 %v136, %v139
    %v171 = vmul.f32 %v134, %v137
    %v172 = vadd.f32 %v170, %v171
    %v173 = vrcp.pop %v172
    %v174 = vmul.f32 %v169, %v173
    %vm175 = vcmp.lt.f32.partialorder %v174, 0.0
    %v176 = vsel %vm175, -1.0, 1.0
    %v177 = vand.u32 2147483647, %v174
    %vm178 = vcmp.gt.f32.partialorder %v177, 2.4142137
    %vm179 = vcmp.gt.f32.partialorder %v177, 0.41421357
    %v180 = vsel %vm179, 0.7853982, 0.0
    %v181 = vsel %vm178, 1.5707964, %v180
    %v182 = vsel %vm178, %v177, 1.0
    %v183 = vrcp.pop %v182
    %v184 = vmul.f32 -1.0, %v183
    %v185 = vsub.f32 %v177, 1.0
    %v186 = vadd.f32 %v177, 1.0
    %v187 = vrcp.pop %v186
    %v188 = vmul.f32 %v185, %v187
    %v189 = vsel %vm179, %v188, %v177
    %v190 = vsel %vm178, %v184, %v189
    %v191 = vmul.f32 %v190, %v190
    %v192 = vmul.f32 %v191, 0.080537446
    %v193 = vsub.f32 %v192, 0.13877685
    %v194 = vmul.f32 %v193, %v191
    %v195 = vadd.f32 %v194, 0.19977711
    %v196 = vmul.f32 %v195, %v191
    %v197 = vsub.f32 %v196, 0.3333295
    %v198 = vmul.f32 %v197, %v191
    %v199 = vmul.f32 %v198, %v190
    %v200 = vadd.f32 %v199, %v190
    %v201 = vadd.f32 %v181, %v200
    %v202 = vmul.f32 %v176, %v201
    %v203 = vmul.f32 %v202, 0.40528473
    %v204 = vmul.f32 %v203, %v202
    %v205 = vsub.f32 %v204, %v146
    %v206 = vadd.f32 %v205, 1.0000001
    %v207 = vrcp.pop %v206
    %v208 = vmul.f32 %v204, %v207
    %v209 = vrcp.pop %v156
    %v210 = vmul.f32 %v166, %v209
    %v211 = vmul.f32 %v204, %v208
    %v212 = vadd.f32 %v210, %v211
    %v213 = vsub.f32 %v146, %v212
    %v214 = vsub.f32 1.0, %v213
    %v215 = vmul.f32 %v214, %v52
    %vm216 = vcmask 1040384
    %v217 = vsel %vm216, %v215, 0.0
    %218 = vadd.xlane.f32.xlu0 %v217
    %v219 = vpop.xlane.xlu0 %218
    %v220 = vrot.slane %v219, 4
    %v221 = vadd.f32 %v219, %v220
    %v222 = vrot.slane %v221, 2
    %v223 = vadd.f32 %v221, %v222
    %v224 = vrot.slane %v223, 1
    %v225 = vadd.f32 %v223, %v224
    %s226 = vtos %v225
    %v227 = vstv %s226
    %vm228 = vcmask 0
    %229 = vst.msk [vmem:[#allocation7] sm:$0x1] %vm228, %v227
    %v230 = vld [vmem:[%s4] sm:$0x7]
    %v231 = vld [vmem:[%s5] sm:$0x7]
    %v232 = vand.u32 2147483647, %v230
    %v233 = vsub.f32 0.0, %v232
    %v234 = vmul.f32 %v233, 1.442695
    %v235 = vpow.pop %v234
    %v236 = vadd.f32 %v235, 1.0
    %v237 = vlog2.pop %v236
    %v238 = vmul.f32 %v237, 0.6931472
    %v239 = vsub.f32 0.0, %v230
    %v240 = vmax.f32 %v239, 0.0
    %v241 = vadd.f32 %v240, %v238
    %v242 = vmul.f32 %v231, %v241
    %v243 = vsub.f32 1.0, %v231
    %v244 = vmax.f32 %v230, 0.0
    %v245 = vadd.f32 %v244, %v238
    %v246 = vmul.f32 %v243, %v245
    %v247 = vadd.f32 %v242, %v246
    %v249 = vlaneseq
    %v250 = vshrl.u32 %v249, 7
    %v251 = vsub.s32 0, %v250
    %v252 = vrot.slane %v52, %v251
    %v254 = vmul.f32 %v247, %v252
    %vm255 = vcmask 1042432
    %v256 = vsel %vm255, %v254, 0.0
    %257 = vadd.xlane.f32.xlu0 %v256
    %v258 = vpop.xlane.xlu0 %257
    %v259 = vrot.slane %v258, 4
    %v260 = vadd.f32 %v258, %v259
    %v261 = vrot.slane %v260, 2
    %v262 = vadd.f32 %v260, %v261
    %v263 = vrot.slane %v262, 1
    %v264 = vadd.f32 %v262, %v263
    %s265 = vtos %v264
    %v266 = vstv %s265
    %267 = vst.msk [vmem:[#allocation8] sm:$0x1] %vm228, %v266
    %v268 = vmax.f32 %v213, 0.0
    %v269 = vmul.f32 %v268, %v52
    %270 = vst [vmem:[#allocation10] sm:$0x1] %v269
    // Predicated region
    $region34: #{tpu_custom_call.1} parent=1 // pred_check
      _
    $region35: #{tpu_custom_call.1} parent=1 // pred_check_branch
      %272 = sbr.rel (0) target = $region37
    $region36: #{tpu_custom_call.1} parent=1 // pred_region
      %s274 = ssub.s32 16, 16
      %275 = vsyncadd [#allocation4], %s274
      %s277 = sshll.u32 [#allocation7], 4
      %s278 = int_to_ptr.vmem [resolvable:$true] %s277
      %280 = dma.vmem_to_hbm [thread:$0]  %s278, 16, %s6, [#allocation4]
    $region37: #{tpu_custom_call.1} parent=1 // pred_fallthru
      _
    // Predicated region
    $region38: #{tpu_custom_call.1} parent=1 // pred_check
      _
    $region39: #{tpu_custom_call.1} parent=1 // pred_check_branch
      %282 = sbr.rel (0) target = $region41
    $region40: #{tpu_custom_call.1} parent=1 // pred_region
      %s284 = ssub.s32 16, 16
      %285 = vsyncadd [#allocation9], %s284
      %s287 = sshll.u32 [#allocation8], 4
      %s288 = int_to_ptr.vmem [resolvable:$true] %s287
      %290 = dma.vmem_to_hbm [thread:$0]  %s288, 16, %s7, [#allocation9]
    $region41: #{tpu_custom_call.1} parent=1 // pred_fallthru
      _
    // Predicated region
    $region42: #{tpu_custom_call.1} parent=1 // pred_check
      _
    $region43: #{tpu_custom_call.1} parent=1 // pred_check_branch
      %292 = sbr.rel (0) target = $region45
    $region44: #{tpu_custom_call.1} parent=1 // pred_region
      %s294 = ssub.s32 16, 16
      %295 = vsyncadd [#allocation9], %s294
      %s297 = sshll.u32 [#allocation10], 4
      %s298 = int_to_ptr.vmem [resolvable:$true] %s297
      %300 = dma.vmem_to_hbm [thread:$0]  %s298, 16, %s8, [#allocation9]
    $region45: #{tpu_custom_call.1} parent=1 // pred_fallthru
      _
    // Predicated region
    $region46: #{tpu_custom_call.1} parent=1 // pred_check
      _
    $region47: #{tpu_custom_call.1} parent=1 // pred_check_branch
      %302 = sbr.rel (0) target = $region49
    $region48: #{tpu_custom_call.1} parent=1 // pred_region
      %303 = dma.done [#allocation4], 16
    $region49: #{tpu_custom_call.1} parent=1 // pred_fallthru
      _
    // Predicated region
    $region50: #{tpu_custom_call.1} parent=1 // pred_check
      _
    $region51: #{tpu_custom_call.1} parent=1 // pred_check_branch
      %305 = sbr.rel (0) target = $region53
    $region52: #{tpu_custom_call.1} parent=1 // pred_region
      %306 = dma.done [#allocation9], 16
    $region53: #{tpu_custom_call.1} parent=1 // pred_fallthru
      _
    // Predicated region
    $region54: #{tpu_custom_call.1} parent=1 // pred_check
      _
    $region55: #{tpu_custom_call.1} parent=1 // pred_check_branch
      %308 = sbr.rel (0) target = $region57
    $region56: #{tpu_custom_call.1} parent=1 // pred_region
      %309 = dma.done [#allocation9], 16
    $region57: #{tpu_custom_call.1} parent=1 // pred_fallthru
      _
    %310 = vsyncpa [#allocation3], 1
    %311 = vsyncpa [#allocation6], 1
    %312 = vsyncpa [#allocation4], 1
    %313 = vsyncpa [#allocation9], 1

</llo_original>
